<compile_context>
chip_gen: v6e
topology: v6e:2x2x1
jax: 0.10.0
libtpu: 0.0.40
codegen_flags: <defaults>
</compile_context>

<pallas_src>
import jax
import jax.numpy as jnp
from jax.experimental import pallas as pl
from jax.experimental.pallas import tpu as pltpu


def _hardsigmoid_kernel(x_ref, o_ref):
    x = x_ref[...]
    # Python-float constants are weakly typed: computation stays in x.dtype
    # (bf16 stays bf16 on v6e/v7x; f32 stays f32).
    y = jnp.minimum(jnp.maximum(x * (1.0 / 6.0) + 0.5, 0.0), 1.0)
    o_ref[...] = y.astype(o_ref.dtype)


def hardsigmoid(x, *, target_block_bytes=4 * 1024 * 1024):
    """Elementwise hardsigmoid via a Pallas TPU kernel. Any shape/float dtype."""
    orig_shape = x.shape
    dtype = x.dtype
    n = x.size
    if n == 0:
        return x

    # Choose the widest lane-dense last dim that divides n exactly so no
    # padding copy is needed (typical NCHW sizes are multiples of 128).
    lane = None
    for cand in (2048, 1024, 512, 256, 128):
        if n % cand == 0:
            lane = cand
            break

    x_flat = jnp.ravel(x)
    if lane is None:
        # Rare fallback: pad only up to the next multiple of 128 lanes.
        lane = 128
        n_pad = pl.cdiv(n, lane) * lane
        x_flat = jnp.pad(x_flat, (0, n_pad - n))
    else:
        n_pad = n

    rows = n_pad // lane
    x2d = x_flat.reshape(rows, lane)

    # Aim for ~target_block_bytes per (double-buffered) buffer; keep the row
    # tile a multiple of 8 (sublane) unless the array is smaller than that.
    bytes_per_row = lane * dtype.itemsize
    target_rows = max(8, (target_block_bytes // bytes_per_row) // 8 * 8)
    if rows <= target_rows:
        block_rows = rows          # full extent (always legal)
        grid = (1,)
    else:
        block_rows = target_rows
        grid = (pl.cdiv(rows, block_rows),)  # partial last block is masked

    out2d = pl.pallas_call(
        _hardsigmoid_kernel,
        out_shape=jax.ShapeDtypeStruct((rows, lane), dtype),
        grid=grid,
        in_specs=[pl.BlockSpec((block_rows, lane), lambda i: (i, 0))],
        out_specs=pl.BlockSpec((block_rows, lane), lambda i: (i, 0)),
        compiler_params=pltpu.CompilerParams(
            dimension_semantics=("parallel",),
            vmem_limit_bytes=32 * 1024 * 1024,
        ),
    )(x2d)

    out_flat = out2d.reshape(-1)
    if n_pad != n:
        out_flat = out_flat[:n]
    return out_flat.reshape(orig_shape)


if __name__ == "__main__":
    key = jax.random.PRNGKey(0)
    # NCHW input, small shape consistent with the eltwise unary test.
    x = jax.random.normal(key, (2, 4, 16, 16), dtype=jnp.float32) * 4.0

    y = hardsigmoid(x)
    jax.block_until_ready(y)

    # Reference (pure JAX): clip(x/6 + 0.5, 0, 1)
    y_ref = jnp.clip(x * (1.0 / 6.0) + 0.5, 0.0, 1.0)
    assert y.shape == x.shape and y.dtype == x.dtype
    assert jnp.max(jnp.abs(y - y_ref)) < 1e-6

    print("KERNEL_OK")
</pallas_src>

<mosaic_0001>
module attributes {stable_mosaic.version = 11 : i64} {
  func.func @_hardsigmoid_kernel(%arg0: i32, %arg1: memref<1x2048xf32, #tpu.memory_space<vmem>>, %arg2: memref<1x2048xf32, #tpu.memory_space<vmem>>) attributes {dimension_semantics = [#tpu.dimension_semantics<parallel>], iteration_bounds = array<i64: 1>, scalar_prefetch = 0 : i64, scratch_operands = 0 : i64, tpu.core_type = #tpu.core_type<tc>, window_params = [{transform_indices = @transform_0, window_bounds = array<i64: 1, 2048>}, {transform_indices = @transform_1, window_bounds = array<i64: 1, 2048>}]} {
    %c0 = arith.constant 0 : index
    %c0_0 = arith.constant 0 : index
    %0 = vector.load %arg1[%c0, %c0_0] : memref<1x2048xf32, #tpu.memory_space<vmem>>, vector<1x2048xf32>
    %cst = arith.constant 0.166666672 : f32
    %1 = vector.broadcast %cst : f32 to vector<1x2048xf32>
    %2 = arith.mulf %0, %1 : vector<1x2048xf32>
    %cst_1 = arith.constant 5.000000e-01 : f32
    %3 = vector.broadcast %cst_1 : f32 to vector<1x2048xf32>
    %4 = arith.addf %2, %3 : vector<1x2048xf32>
    %cst_2 = arith.constant 0.000000e+00 : f32
    %5 = vector.broadcast %cst_2 : f32 to vector<1x2048xf32>
    %6 = arith.maximumf %4, %5 : vector<1x2048xf32>
    %cst_3 = arith.constant 1.000000e+00 : f32
    %7 = vector.broadcast %cst_3 : f32 to vector<1x2048xf32>
    %8 = arith.minimumf %6, %7 : vector<1x2048xf32>
    %c0_4 = arith.constant 0 : index
    %c0_5 = arith.constant 0 : index
    %9 = vector.load %arg2[%c0_4, %c0_5] : memref<1x2048xf32, #tpu.memory_space<vmem>>, vector<1x2048xf32>
    tpu.vector_store %arg2[%c0_4, %c0_5], %8 {strides = array<i32>} : memref<1x2048xf32, #tpu.memory_space<vmem>>, vector<1x2048xf32>,
    return
  }
  func.func @transform_0(%arg0: i32) -> (i32, i32) {
    %c0_i32 = arith.constant 0 : i32
    %c0_i32_0 = arith.constant 0 : i32
    return %arg0, %c0_i32 : i32, i32
  }
  func.func @transform_1(%arg0: i32) -> (i32, i32) {
    %c0_i32 = arith.constant 0 : i32
    %c0_i32_0 = arith.constant 0 : i32
    return %arg0, %c0_i32 : i32, i32
  }
}

</mosaic_0001>

<llo_original>
// kernel: tpu_custom_call.1
$region0: #{tpu_custom_call.1}
  #allocation0 [shape = 'u32[]', space=smem, size = 0x4, offset = 0x4, fixed_abs, tag = 'smem constant byte address 0x4 - core index']
  #allocation1 [shape = 'u32[144,128]{1,0:T(1,128)}', space=vmem, size = 0x12000, scoped, tag = 'internal scratch']
  %s0 = inlined_call_operand.hbm [shape: f32[1,2048], index: 0, kind: input, shape index: {}]
  %s1 = inlined_call_operand.hbm [shape: f32[1,2048], index: 1, kind: output, shape index: {}]
  %s2 = sld [smem:[#allocation0]]
  $region18: #{tpu_custom_call.1} parent=0
    _
  %s4 = ssub.s32 1, %s2
  %s5 = scalar_select 0, %s4, %s2
  $region1: #{tpu_custom_call.1} parent=0
    #allocation2 [shape = 'u8[8192]{0}', space=vmem, size = 0x2000, scoped, tag = 'input window, operand 0, single buffered']
    #allocation3 [shape = 's32[1]{0}', space=sflag, size = 0x4, scoped, tag = 'scoped memory for tpu_custom_call.1']
    #allocation4 [shape = 's32[1]{0}', space=sflag, size = 0x4, scoped, tag = 'scoped memory for tpu_custom_call.1']
    #allocation5 [shape = 'u8[8192]{0}', space=vmem, size = 0x2000, scoped, tag = 'output window, operand 0, single buffered']
    %6 = vsyncpa [#allocation3], 0
    %7 = vsyncpa [#allocation4], 0
    // Predicated region
    $region2: #{tpu_custom_call.1} parent=1 // pred_check
      _
    $region3: #{tpu_custom_call.1} parent=1 // pred_check_branch
      %9 = sbr.rel (0) target = $region5
    $region4: #{tpu_custom_call.1} parent=1 // pred_region
      %s11 = ssub.s32 256, 256
      %12 = vsyncadd [#allocation3], %s11
      %s14 = sshll.u32 [#allocation2], 4
      %s15 = int_to_ptr.vmem [resolvable:$true] %s14
      %17 = dma.hbm_to_vmem [thread:$0]  %s0, 256, %s15, [#allocation3]
    $region5: #{tpu_custom_call.1} parent=1 // pred_fallthru
      _
    // Predicated region
    $region6: #{tpu_custom_call.1} parent=1 // pred_check
      _
    $region7: #{tpu_custom_call.1} parent=1 // pred_check_branch
      %19 = sbr.rel (0) target = $region9
    $region8: #{tpu_custom_call.1} parent=1 // pred_region
      %20 = dma.done [#allocation3], 256
    $region9: #{tpu_custom_call.1} parent=1 // pred_fallthru
      _
    %v21 = vld [vmem:[#allocation2] sm:$0xff]
    %v22 = vld [vmem:[#allocation2 + $0x8] sm:$0xff]
    %v23 = vmul.f32 %v21, 0.16666667
    %v24 = vmul.f32 %v22, 0.16666667
    %v25 = vadd.f32 %v23, 0.5
    %v26 = vadd.f32 %v24, 0.5
    %v27 = vmax.f32 %v25, 0.0
    %v28 = vmax.f32 %v26, 0.0
    %v29 = vmin.f32 %v27, 1.0
    %v30 = vmin.f32 %v28, 1.0
    %31 = vst [vmem:[#allocation5] sm:$0xff] %v29
    %32 = vst [vmem:[#allocation5 + $0x8] sm:$0xff] %v30
    // Predicated region
    $region10: #{tpu_custom_call.1} parent=1 // pred_check
      _
    $region11: #{tpu_custom_call.1} parent=1 // pred_check_branch
      %34 = sbr.rel (0) target = $region13
    $region12: #{tpu_custom_call.1} parent=1 // pred_region
      %s36 = ssub.s32 256, 256
      %37 = vsyncadd [#allocation4], %s36
      %s39 = sshll.u32 [#allocation5], 4
      %s40 = int_to_ptr.vmem [resolvable:$true] %s39
      %42 = dma.vmem_to_hbm [thread:$0]  %s40, 256, %s1, [#allocation4]
    $region13: #{tpu_custom_call.1} parent=1 // pred_fallthru
      _
    // Predicated region
    $region14: #{tpu_custom_call.1} parent=1 // pred_check
      _
    $region15: #{tpu_custom_call.1} parent=1 // pred_check_branch
      %44 = sbr.rel (0) target = $region17
    $region16: #{tpu_custom_call.1} parent=1 // pred_region
      %45 = dma.done [#allocation4], 256
    $region17: #{tpu_custom_call.1} parent=1 // pred_fallthru
      _
    %46 = vsyncpa [#allocation3], 1
    %47 = vsyncpa [#allocation4], 1

</llo_original>
